<compile_context>
chip_gen: v6e
topology: v6e:2x2x1
jax: 0.10.0
libtpu: 0.0.40
codegen_flags: <defaults>
</compile_context>

<pallas_src>
import math

import jax
import jax.numpy as jnp
from jax.experimental import pallas as pl
from jax.experimental.pallas import tpu as pltpu

# Large-negative fill for padded class columns (exp -> 0).  Fits f32/bf16;
# would overflow float16 -- those values only live in padded columns that are
# sliced away before returning.
_NEG_BIG = -1e30

_VMEM_BUDGET = 56 << 20  # conservative per-core budget (v7x: 64 MiB/TC)


def linear_logsoftmax_kernel(x_ref, wt_ref, b_ref, o_ref):
    # x_ref:  [TM, Dp]  batch tile (ragged last tile: any garbage rows are
    #                   row-local and masked out of the final store)
    # wt_ref: [Dp, Np]  pre-transposed weight, VMEM-resident (Buffered(1))
    # b_ref:  [1,  Np]  f32 bias; padded classes hold a huge negative value
    # o_ref:  [TM, Np]  log-softmax output tile
    x = x_ref[...].astype(wt_ref.dtype)  # bf16 fast path: cheap in-kernel cast
    logits = jnp.dot(x, wt_ref[...], preferred_element_type=jnp.float32)
    logits = logits + b_ref[...]         # f32 from here on
    # Numerically stable log-softmax along the class axis (dim=1).
    m = jnp.max(logits, axis=-1, keepdims=True)
    z = logits - m
    lse = jnp.log(jnp.sum(jnp.exp(z), axis=-1, keepdims=True))
    o_ref[...] = (z - lse).astype(o_ref.dtype)


def _round_up(v, m):
    return ((v + m - 1) // m) * m


def _default_block_m():
    try:
        kind = jax.devices()[0].device_kind.lower()
    except Exception:
        return 256
    if "v5 lite" in kind or "v5e" in kind or "v5lite" in kind:
        return 128  # v5e: 4x128 MXU, 1 vst slot, tighter VMEM defaults
    return 256


def prepare_params(w, b, *, use_bf16_matmul=False):
    """One-time parameter preprocessing (hoisted out of the per-call path).

    w: [nclass, input_dim] (PyTorch nn.Linear layout), b: [nclass].
    Returns (wt_p, b_p, nclass): lane-dense [Dp, Np] transposed weight and a
    [1, Np] f32 bias whose padded class columns hold a huge negative value.
    """
    N, D = w.shape
    assert b.shape == (N,)
    Dp, Np = _round_up(D, 128), _round_up(N, 128)
    w_dtype = jnp.bfloat16 if use_bf16_matmul else w.dtype
    wt_p = jnp.pad(w.T.astype(w_dtype), ((0, Dp - D), (0, Np - N)))
    b_p = jnp.pad(
        b.astype(jnp.float32).reshape(1, N),
        ((0, 0), (0, Np - N)),
        constant_values=_NEG_BIG,
    )
    return wt_p, b_p, N


def linear_logsoftmax_prepared(x, wt_p, b_p, nclass, *, block_m=None):
    """Forward of LINEAR_LOGSOFTMAX with pre-prepared parameters."""
    M, D = x.shape
    Dp, Np = wt_p.shape
    assert D <= Dp, "input feature dim larger than prepared weight"
    if block_m is None:
        block_m = _default_block_m()

    # Pad features only when D isn't 128-aligned (zero columns -> no effect).
    x_p = x if Dp == D else jnp.pad(x, ((0, 0), (0, Dp - D)))

    x_item = jnp.dtype(x.dtype).itemsize
    w_item = jnp.dtype(wt_p.dtype).itemsize

    def footprint(tm):
        return (
            2 * tm * Dp * x_item      # x tile, double-buffered
            + Dp * Np * w_item        # weight, single-buffered, resident
            + Np * 4                  # bias
            + 2 * tm * Np * x_item    # output tile, double-buffered
            + 3 * tm * Np * 4         # f32 logits / exp temporaries
        )

    TM = max(8, min(_round_up(block_m, 8), _round_up(M, 8)))
    while footprint(TM) > _VMEM_BUDGET and TM > 8:
        TM = max(8, (TM // 2 // 8) * 8)
    fp = footprint(TM)
    if fp > _VMEM_BUDGET:
        # TODO(synk): streamed class-axis (online logsumexp) variant for
        # layers whose [Dp, Np] weight alone exceeds the per-core VMEM budget.
        raise ValueError(
            f"weight-resident footprint {fp} B exceeds the VMEM budget; "
            "input_dim * nclass too large for this kernel variant")

    grid = (pl.cdiv(M, TM),)
    vmem_limit = min(max(int(fp * 1.25) + (4 << 20), 32 << 20), 60 << 20)

    cost = pl.CostEstimate(
        flops=2 * M * Np * Dp,
        transcendentals=M * Np + M,       # exp per logit + log per row
        bytes_accessed=(
            M * Dp * x_item               # x
            + Dp * Np * w_item            # weight (one copy per TC on v7x)
            + Np * 4                      # bias
            + M * Np * x_item             # output
        ),
    )

    out = pl.pallas_call(
        linear_logsoftmax_kernel,
        out_shape=jax.ShapeDtypeStruct((M, Np), x.dtype),
        grid=grid,
        in_specs=[
            pl.BlockSpec((TM, Dp), lambda i: (i, 0)),   # batch tile of x
            pl.BlockSpec((Dp, Np), lambda i: (0, 0),    # weight: resident,
                         pipeline_mode=pl.Buffered(1)), # single-buffered
            pl.BlockSpec((1, Np), lambda i: (0, 0),     # bias: resident,
                         pipeline_mode=pl.Buffered(1)), # single-buffered
        ],
        out_specs=pl.BlockSpec((TM, Np), lambda i: (i, 0)),
        compiler_params=pltpu.CompilerParams(
            dimension_semantics=("parallel",),
            vmem_limit_bytes=vmem_limit,
        ),
        cost_estimate=cost,
    )(x_p, wt_p, b_p)

    # Column slice only when class padding actually occurred.
    return out if Np == nclass else out[:, :nclass]


def linear_logsoftmax(x, w, b, *, block_m=None, use_bf16_matmul=False):
    """log_softmax(x @ w.T + b, axis=1).

    Convenience wrapper.  For repeated calls with fixed parameters, call
    prepare_params() once and use linear_logsoftmax_prepared() directly so the
    weight transpose/pad is not re-done (and re-read from HBM) per call.
    """
    wt_p, b_p, nclass = prepare_params(w, b, use_bf16_matmul=use_bf16_matmul)
    return linear_logsoftmax_prepared(x, wt_p, b_p, nclass, block_m=block_m)


def init_params(key, input_dim, nclass, dtype=jnp.float32):
    # Deterministic init mirroring nn.Linear's default:
    # U(-1/sqrt(fan_in), 1/sqrt(fan_in)) for both weight and bias.
    kw, kb = jax.random.split(key)
    bound = 1.0 / math.sqrt(input_dim)
    w = jax.random.uniform(kw, (nclass, input_dim), dtype, -bound, bound)
    b = jax.random.uniform(kb, (nclass,), dtype, -bound, bound)
    return w, b


if __name__ == "__main__":
    batch, input_dim, nclass = 8, 64, 16

    key = jax.random.PRNGKey(0)
    kx, kp = jax.random.split(key)
    x = jax.random.normal(kx, (batch, input_dim), jnp.float32)
    w, b = init_params(kp, input_dim, nclass)

    ref = jax.nn.log_softmax(x @ w.T + b, axis=1)

    # f32 (parity) path.
    out = linear_logsoftmax(x, w, b)
    jax.block_until_ready(out)
    assert out.shape == (batch, nclass)
    assert jnp.allclose(out, ref, atol=1e-5, rtol=1e-5)

    # bf16 MXU-feed fast path (prepared params reused across calls).
    wt_p, b_p, n_valid = prepare_params(w, b, use_bf16_matmul=True)
    out_bf16 = linear_logsoftmax_prepared(x, wt_p, b_p, n_valid)
    jax.block_until_ready(out_bf16)
    assert out_bf16.shape == (batch, nclass)
    assert jnp.allclose(out_bf16, ref, atol=5e-2, rtol=5e-2)

    print("KERNEL_OK")
</pallas_src>

<mosaic_0001>
module attributes {stable_mosaic.version = 11 : i64} {
  func.func @linear_logsoftmax_kernel(%arg0: i32, %arg1: memref<8x128xf32, #tpu.memory_space<vmem>>, %arg2: memref<128x128xf32, #tpu.memory_space<vmem>>, %arg3: memref<1x128xf32, #tpu.memory_space<vmem>>, %arg4: memref<8x128xf32, #tpu.memory_space<vmem>>) attributes {dimension_semantics = [#tpu.dimension_semantics<parallel>], iteration_bounds = array<i64: 1>, scalar_prefetch = 0 : i64, scratch_operands = 0 : i64, tpu.core_type = #tpu.core_type<tc>, window_params = [{transform_indices = @transform_0, window_bounds = array<i64: 8, 128>}, {pipeline_mode = #tpu.pipeline_mode<synchronous>, transform_indices = @transform_1, window_bounds = array<i64: 128, 128>}, {pipeline_mode = #tpu.pipeline_mode<synchronous>, transform_indices = @transform_2, window_bounds = array<i64: 1, 128>}, {transform_indices = @transform_3, window_bounds = array<i64: 8, 128>}]} {
    %c0 = arith.constant 0 : index
    %c0_0 = arith.constant 0 : index
    %0 = vector.load %arg1[%c0, %c0_0] : memref<8x128xf32, #tpu.memory_space<vmem>>, vector<8x128xf32>
    %c0_1 = arith.constant 0 : index
    %c0_2 = arith.constant 0 : index
    %1 = vector.load %arg2[%c0_1, %c0_2] : memref<128x128xf32, #tpu.memory_space<vmem>>, vector<128x128xf32>
    %cst = arith.constant dense<0.000000e+00> : vector<8x128xf32>
    %2 = tpu.matmul %0, %1, %cst {dimension_numbers = #tpu.dot_dimension_numbers<[1], [0], [0], [1], [0, 0, 1, 1], [], []>} : vector<8x128xf32>, vector<128x128xf32>, vector<8x128xf32> -> vector<8x128xf32>
    %c0_3 = arith.constant 0 : index
    %c0_4 = arith.constant 0 : index
    %3 = vector.load %arg3[%c0_3, %c0_4] : memref<1x128xf32, #tpu.memory_space<vmem>>, vector<1x128xf32>
    %4 = vector.broadcast %3 : vector<1x128xf32> to vector<8x128xf32>
    %5 = arith.addf %2, %4 : vector<8x128xf32>
    %cst_5 = arith.constant dense<0xFF800000> : vector<8xf32>
    %6 = vector.multi_reduction <maximumf>, %5, %cst_5 [1] : vector<8x128xf32> to vector<8xf32>
    %7 = vector.shape_cast %6 : vector<8xf32> to vector<8x1xf32>
    %8 = vector.broadcast %7 : vector<8x1xf32> to vector<8x128xf32>
    %9 = arith.subf %5, %8 : vector<8x128xf32>
    %10 = math.exp %9 : vector<8x128xf32>
    %cst_6 = arith.constant dense<0.000000e+00> : vector<8xf32>
    %11 = vector.multi_reduction <add>, %10, %cst_6 [1] : vector<8x128xf32> to vector<8xf32>
    %12 = vector.shape_cast %11 : vector<8xf32> to vector<8x1xf32>
    %13 = math.log %12 : vector<8x1xf32>
    %14 = vector.broadcast %13 : vector<8x1xf32> to vector<8x128xf32>
    %15 = arith.subf %9, %14 : vector<8x128xf32>
    %c0_7 = arith.constant 0 : index
    %c0_8 = arith.constant 0 : index
    %16 = vector.load %arg4[%c0_7, %c0_8] : memref<8x128xf32, #tpu.memory_space<vmem>>, vector<8x128xf32>
    tpu.vector_store %arg4[%c0_7, %c0_8], %15 {strides = array<i32>} : memref<8x128xf32, #tpu.memory_space<vmem>>, vector<8x128xf32>,
    return
  }
  func.func @transform_0(%arg0: i32) -> (i32, i32) {
    %c0_i32 = arith.constant 0 : i32
    %c0_i32_0 = arith.constant 0 : i32
    return %arg0, %c0_i32 : i32, i32
  }
  func.func @transform_1(%arg0: i32) -> (i32, i32) {
    %c0_i32 = arith.constant 0 : i32
    %c0_i32_0 = arith.constant 0 : i32
    %c0_i32_1 = arith.constant 0 : i32
    return %c0_i32, %c0_i32_0 : i32, i32
  }
  func.func @transform_2(%arg0: i32) -> (i32, i32) {
    %c0_i32 = arith.constant 0 : i32
    %c0_i32_0 = arith.constant 0 : i32
    %c0_i32_1 = arith.constant 0 : i32
    return %c0_i32, %c0_i32_0 : i32, i32
  }
  func.func @transform_3(%arg0: i32) -> (i32, i32) {
    %c0_i32 = arith.constant 0 : i32
    %c0_i32_0 = arith.constant 0 : i32
    return %arg0, %c0_i32 : i32, i32
  }
}

</mosaic_0001>

<llo_original>
// kernel: tpu_custom_call.1
$region0: #{tpu_custom_call.1}
  #allocation0 [shape = 'u32[]', space=smem, size = 0x4, offset = 0x4, fixed_abs, tag = 'smem constant byte address 0x4 - core index']
  #allocation1 [shape = 'u32[144,128]{1,0:T(1,128)}', space=vmem, size = 0x12000, scoped, tag = 'internal scratch']
  %s0 = inlined_call_operand.hbm [shape: f32[8,128], index: 0, kind: input, shape index: {}]
  %s1 = inlined_call_operand.hbm [shape: f32[128,128], index: 1, kind: input, shape index: {}]
  %s2 = inlined_call_operand.vmem [shape: f32[1,128], index: 2, kind: input, shape index: {}]
  %s3 = inlined_call_operand.hbm [shape: f32[8,128], index: 3, kind: output, shape index: {}]
  %s4 = sld [smem:[#allocation0]]
  $region30: #{tpu_custom_call.1} parent=0
    _
  %s6 = ssub.s32 1, %s4
  %s7 = scalar_select 0, %s6, %s4
  $region1: #{tpu_custom_call.1} parent=0
    #allocation2 [shape = 'u8[4096]{0}', space=vmem, size = 0x1000, scoped, tag = 'input window, operand 0, single buffered']
    #allocation3 [shape = 's32[1]{0}', space=sflag, size = 0x4, scoped, tag = 'scoped memory for tpu_custom_call.1']
    #allocation4 [shape = 's32[1]{0}', space=sflag, size = 0x4, scoped, tag = 'scoped memory for tpu_custom_call.1']
    #allocation5 [shape = 'u8[65536]{0}', space=vmem, size = 0x10000, scoped, tag = 'input window, operand 1, single buffered']
    #allocation6 [shape = 's32[1]{0}', space=sflag, size = 0x4, scoped, tag = 'scoped memory for tpu_custom_call.1']
    #allocation7 [shape = 'u8[4096]{0}', space=vmem, size = 0x1000, scoped, tag = 'output window, operand 0, single buffered']
    %8 = vsyncpa [#allocation3], 0
    %9 = vsyncpa [#allocation6], 0
    %10 = vsyncpa [#allocation4], 0
    // Predicated region
    $region2: #{tpu_custom_call.1} parent=1 // pred_check
      _
    $region3: #{tpu_custom_call.1} parent=1 // pred_check_branch
      %12 = sbr.rel (0) target = $region5
    $region4: #{tpu_custom_call.1} parent=1 // pred_region
      %s14 = ssub.s32 128, 128
      %15 = vsyncadd [#allocation3], %s14
      %s17 = sshll.u32 [#allocation2], 4
      %s18 = int_to_ptr.vmem [resolvable:$true] %s17
      %20 = dma.hbm_to_vmem [thread:$0]  %s0, 128, %s18, [#allocation3]
    $region5: #{tpu_custom_call.1} parent=1 // pred_fallthru
      _
    // Predicated region
    $region6: #{tpu_custom_call.1} parent=1 // pred_check
      _
    $region7: #{tpu_custom_call.1} parent=1 // pred_check_branch
      %22 = sbr.rel (0) target = $region9
    $region8: #{tpu_custom_call.1} parent=1 // pred_region
      %s24 = ssub.s32 2048, 2048
      %25 = vsyncadd [#allocation6], %s24
      %s26 = sshll.u32 [#allocation5], 4
      %s27 = int_to_ptr.vmem [resolvable:$true] %s26
      %32 = dma.hbm_to_vmem [thread:$0]  %s1, 2048, %s27, [#allocation6], 128, 128, 8
    $region9: #{tpu_custom_call.1} parent=1 // pred_fallthru
      _
    // Predicated region
    $region10: #{tpu_custom_call.1} parent=1 // pred_check
      _
    $region11: #{tpu_custom_call.1} parent=1 // pred_check_branch
      %34 = sbr.rel (0) target = $region13
    $region12: #{tpu_custom_call.1} parent=1 // pred_region
      _
    $region13: #{tpu_custom_call.1} parent=1 // pred_fallthru
      _
    // Predicated region
    $region14: #{tpu_custom_call.1} parent=1 // pred_check
      _
    $region15: #{tpu_custom_call.1} parent=1 // pred_check_branch
      %36 = sbr.rel (0) target = $region17
    $region16: #{tpu_custom_call.1} parent=1 // pred_region
      %37 = dma.done [#allocation3], 128
    $region17: #{tpu_custom_call.1} parent=1 // pred_fallthru
      _
    // Predicated region
    $region18: #{tpu_custom_call.1} parent=1 // pred_check
      _
    $region19: #{tpu_custom_call.1} parent=1 // pred_check_branch
      %39 = sbr.rel (0) target = $region21
    $region20: #{tpu_custom_call.1} parent=1 // pred_region
      %40 = dma.done [#allocation6], 2048
    $region21: #{tpu_custom_call.1} parent=1 // pred_fallthru
      _
    %v41 = vld [vmem:[#allocation2] sm:$0xff]
    %v42 = vld [vmem:[#allocation5] sm:$0xff]
    %v43 = vld [vmem:[#allocation5 + $0x8] sm:$0xff]
    %v44 = vld [vmem:[#allocation5 + $0x10] sm:$0xff]
    %v45 = vld [vmem:[#allocation5 + $0x18] sm:$0xff]
    %v46 = vld [vmem:[#allocation5 + $0x20] sm:$0xff]
    %v47 = vld [vmem:[#allocation5 + $0x28] sm:$0xff]
    %v48 = vld [vmem:[#allocation5 + $0x30] sm:$0xff]
    %v49 = vld [vmem:[#allocation5 + $0x38] sm:$0xff]
    %v50 = vld [vmem:[#allocation5 + $0x40] sm:$0xff]
    %v51 = vld [vmem:[#allocation5 + $0x48] sm:$0xff]
    %v52 = vld [vmem:[#allocation5 + $0x50] sm:$0xff]
    %v53 = vld [vmem:[#allocation5 + $0x58] sm:$0xff]
    %v54 = vld [vmem:[#allocation5 + $0x60] sm:$0xff]
    %v55 = vld [vmem:[#allocation5 + $0x68] sm:$0xff]
    %v56 = vld [vmem:[#allocation5 + $0x70] sm:$0xff]
    %v57 = vld [vmem:[#allocation5 + $0x78] sm:$0xff]
    %v58 = vld [vmem:[%s2] sm:$0x1]
    %v60 = vlaneseq
    %v61 = vshrl.u32 %v60, 7
    %v62 = vsub.s32 0, %v61
    %v63 = vrot.slane %v58, %v62
    %65 = vmatprep.subr.mxu0 0.0
    %66 = vmatpush1.msra.mxu0 %v57
    %67 = vmatprep.subr.mxu0 0.0
    %68 = vmatpush1.msra.mxu0 %v56
    %69 = vmatprep.subr.mxu0 0.0
    %70 = vmatpush1.msra.mxu0 %v55
    %71 = vmatprep.subr.mxu0 0.0
    %72 = vmatpush1.msra.mxu0 %v54
    %73 = vmatprep.subr.mxu0 0.0
    %74 = vmatpush1.msra.mxu0 %v53
    %75 = vmatprep.subr.mxu0 0.0
    %76 = vmatpush1.msra.mxu0 %v52
    %77 = vmatprep.subr.mxu0 0.0
    %78 = vmatpush1.msra.mxu0 %v51
    %79 = vmatprep.subr.mxu0 0.0
    %80 = vmatpush1.msra.mxu0 %v50
    %81 = vmatprep.subr.mxu0 0.0
    %82 = vmatpush1.msra.mxu0 %v49
    %83 = vmatprep.subr.mxu0 0.0
    %84 = vmatpush1.msra.mxu0 %v48
    %85 = vmatprep.subr.mxu0 0.0
    %86 = vmatpush1.msra.mxu0 %v47
    %87 = vmatprep.subr.mxu0 0.0
    %88 = vmatpush1.msra.mxu0 %v46
    %89 = vmatprep.subr.mxu0 0.0
    %90 = vmatpush1.msra.mxu0 %v45
    %91 = vmatprep.subr.mxu0 0.0
    %92 = vmatpush1.msra.mxu0 %v44
    %93 = vmatprep.subr.mxu0 0.0
    %94 = vmatpush1.msra.mxu0 %v43
    %95 = vmatprep.subr.mxu0 0.0
    %96 = vmatpush1.msra.mxu0 %v42
    %97 = vmatprep.subr.mxu0 0.0
    %98 = vmatpush2.msra.mxu0 0.0
    %99 = vmatprep.subr.mxu0 0.0
    %100 = vmatpush2.msra.mxu0 0.0
    %101 = vmatprep.subr.mxu0 0.0
    %102 = vmatpush2.msra.mxu0 0.0
    %103 = vmatprep.subr.mxu0 0.0
    %104 = vmatpush2.msra.mxu0 0.0
    %105 = vmatprep.subr.mxu0 0.0
    %106 = vmatpush2.msra.mxu0 0.0
    %107 = vmatprep.subr.mxu0 0.0
    %108 = vmatpush2.msra.mxu0 0.0
    %109 = vmatprep.subr.mxu0 0.0
    %110 = vmatpush2.msra.mxu0 0.0
    %111 = vmatprep.subr.mxu0 0.0
    %112 = vmatpush2.msra.mxu0 0.0
    %113 = vmatprep.subr.mxu0 0.0
    %114 = vmatpush2.msra.mxu0 0.0
    %115 = vmatprep.subr.mxu0 0.0
    %116 = vmatpush2.msra.mxu0 0.0
    %117 = vmatprep.subr.mxu0 0.0
    %118 = vmatpush2.msra.mxu0 0.0
    %119 = vmatprep.subr.mxu0 0.0
    %120 = vmatpush2.msra.mxu0 0.0
    %121 = vmatprep.subr.mxu0 0.0
    %122 = vmatpush2.msra.mxu0 0.0
    %123 = vmatprep.subr.mxu0 0.0
    %124 = vmatpush2.msra.mxu0 0.0
    %125 = vmatprep.subr.mxu0 0.0
    %126 = vmatpush2.msra.mxu0 0.0
    %127 = vmatprep.subr.mxu0 0.0
    %128 = vmatpush2.msra.mxu0 0.0
    %129 = vmatprep.mubr.f32.mxu0 0.0
    %130 = vmatmul.mubr.f32.gmra.mxu0 %v41
    %v131 = vpop.f32.mrf.mxu0
    %v132 = vadd.f32 %v63, %v131
    %v133 = vpop.f32.mrf.mxu0
    %134 = vdwg.mxu0
    %135 = vmax.xlane.f32.xlu0 %v132
    %v136 = vpop.xlane.xlu0 %135
    %v137 = vsub.f32 %v132, %v136
    %v138 = vmul.f32 %v137, 1.442695
    %v139 = vpow.pop %v138
    %140 = vadd.xlane.f32.xlu0 %v139
    %v141 = vpop.xlane.xlu0 %140
    %v142 = vlog2.pop %v141
    %v143 = vmul.f32 %v142, 0.6931472
    %v144 = vsub.f32 %v137, %v143
    %145 = vst [vmem:[#allocation7] sm:$0xff] %v144
    // Predicated region
    $region22: #{tpu_custom_call.1} parent=1 // pred_check
      _
    $region23: #{tpu_custom_call.1} parent=1 // pred_check_branch
      %147 = sbr.rel (0) target = $region25
    $region24: #{tpu_custom_call.1} parent=1 // pred_region
      %s149 = ssub.s32 128, 128
      %150 = vsyncadd [#allocation4], %s149
      %s152 = sshll.u32 [#allocation7], 4
      %s153 = int_to_ptr.vmem [resolvable:$true] %s152
      %155 = dma.vmem_to_hbm [thread:$0]  %s153, 128, %s3, [#allocation4]
    $region25: #{tpu_custom_call.1} parent=1 // pred_fallthru
      _
    // Predicated region
    $region26: #{tpu_custom_call.1} parent=1 // pred_check
      _
    $region27: #{tpu_custom_call.1} parent=1 // pred_check_branch
      %157 = sbr.rel (0) target = $region29
    $region28: #{tpu_custom_call.1} parent=1 // pred_region
      %158 = dma.done [#allocation4], 128
    $region29: #{tpu_custom_call.1} parent=1 // pred_fallthru
      _
    %159 = vsyncpa [#allocation3], 1
    %160 = vsyncpa [#allocation6], 1
    %161 = vsyncpa [#allocation4], 1

</llo_original>
